<compile_context>
chip_gen: v7x
topology: tpu7x:2x2x1
jax: 0.10.0
libtpu: 0.0.40
codegen_flags: <defaults>
</compile_context>

<pallas_src>
import functools

import jax
import jax.numpy as jnp
from jax.experimental import pallas as pl
from jax.experimental.pallas import tpu as pltpu


def _round_up(x, m):
    return ((x + m - 1) // m) * m


# ----------------------------------------------------------------------------
# Minimal env spec (discrete obs + discrete actions), just enough for shapes.
# ----------------------------------------------------------------------------
class EnvSpec:
    DISCRETE = "discrete"
    BOX = "box"

    def __init__(self, obs_dims_and_types, act_dims_and_types):
        self.obs_dims_and_types = obs_dims_and_types
        self.act_dims_and_types = act_dims_and_types

    def is_discrete(self, act_type):
        return act_type == self.DISCRETE

    def is_box(self, act_type):
        return act_type == self.BOX

    def sampling_dim(self, act_dim, act_type):
        # discrete: logits over act_dim; box: mean+std -> 2*act_dim
        return act_dim if self.is_discrete(act_type) else 2 * act_dim

    @property
    def total_sampling_act_dim(self):
        return sum(self.sampling_dim(d, t) for d, t in self.act_dims_and_types)

    @property
    def total_obs_onehot_dim(self):
        return sum(d for d, _ in self.obs_dims_and_types)

    @property
    def total_act_onehot_dim(self):
        return sum(d for d, _ in self.act_dims_and_types)


# ----------------------------------------------------------------------------
# Pallas kernel: fused gate projection + LSTM cell (1 step) + output Dense.
#   xz     : (B, Kp)     bf16, [enc_in | h0] zero-padded to Kp lanes
#   w_gate : (Kp, 4*Hp)  bf16, stacked [W_enc@W_ih ; W_hh], per-gate Hp blocks
#   b_gate : (1, 4*Hp)   f32,  b_enc@W_ih + b_ih + b_hh, per-gate Hp blocks
#   c0     : (B, Hp)     f32   (zero-padded)
#   w_out  : (Hp, Ap)    bf16  (zero-padded transposed Linear weight)
#   b_out  : (1, Ap)     f32
# outputs: logits (B, Ap), h1 (B, Hp), c1 (B, Hp) — all f32, sliced in wrapper.
# ----------------------------------------------------------------------------
def _policy_fwd_kernel(
    xz_ref, w_gate_ref, b_gate_ref, c0_ref, w_out_ref, b_out_ref,
    logits_ref, h1_ref, c1_ref,
):
    Hp = h1_ref.shape[-1]

    # One fused MXU matmul for all four gates (f32 accumulation).
    gates = (
        jnp.dot(xz_ref[...], w_gate_ref[...], preferred_element_type=jnp.float32)
        + b_gate_ref[...]
    )

    # PyTorch gate order (i, f, g, o); slices are 128-lane aligned (Hp = 128k).
    i_g = jax.nn.sigmoid(gates[:, 0 * Hp:1 * Hp])
    f_g = jax.nn.sigmoid(gates[:, 1 * Hp:2 * Hp])
    g_g = jnp.tanh(gates[:, 2 * Hp:3 * Hp])
    o_g = jax.nn.sigmoid(gates[:, 3 * Hp:4 * Hp])

    c1 = f_g * c0_ref[...] + i_g * g_g          # f32 elementwise (v5e-safe)
    h1 = o_g * jnp.tanh(c1)

    logits_ref[...] = (
        jnp.dot(h1.astype(w_out_ref.dtype), w_out_ref[...],
                preferred_element_type=jnp.float32)
        + b_out_ref[...]
    )
    h1_ref[...] = h1
    c1_ref[...] = c1


@functools.partial(jax.jit, static_argnames=("H", "A"))
def _policy_fwd_pallas(enc_in, h0, c0, w_gate, b_gate, w_out, b_out, *, H, A):
    B, E = enc_in.shape
    Kp = w_gate.shape[0]
    Hp = w_gate.shape[1] // 4
    Ap = w_out.shape[-1]

    # Lane-dense, zero-padded [enc_in | h0] as a single bf16 MXU operand.
    xz = jnp.zeros((B, Kp), jnp.float32)
    xz = xz.at[:, :E].set(enc_in).at[:, E:E + H].set(h0)
    xz = xz.astype(jnp.bfloat16)

    c0_p = jnp.zeros((B, Hp), jnp.float32).at[:, :H].set(c0)

    vmem = pl.BlockSpec(memory_space=pltpu.MemorySpace.VMEM)
    out_shapes = (
        jax.ShapeDtypeStruct((B, Ap), jnp.float32),  # logits (padded)
        jax.ShapeDtypeStruct((B, Hp), jnp.float32),  # h1 (padded)
        jax.ShapeDtypeStruct((B, Hp), jnp.float32),  # c1 (padded)
    )
    logits_p, h1_p, c1_p = pl.pallas_call(
        _policy_fwd_kernel,
        out_shape=out_shapes,
        in_specs=[vmem] * 6,
        out_specs=(vmem, vmem, vmem),
        input_output_aliases={3: 2},   # c0 buffer is reused for c1
        compiler_params=pltpu.CompilerParams(vmem_limit_bytes=64 * 1024 * 1024),
    )(xz, w_gate, b_gate, c0_p, w_out, b_out)

    return logits_p[:, :A], h1_p[:, :H], c1_p[:, :H]


# ----------------------------------------------------------------------------
# JAX-level NewPolicy (glue around the Pallas kernel).
# ----------------------------------------------------------------------------
class NewPolicyPallas:
    def __init__(self, env_spec, internal_dim, input_prev_actions,
                 lstm_hidden_size, key):
        self.env_spec = env_spec
        self.internal_dim = internal_dim  # kept for parity; torch encoder width
        self.input_prev_actions = input_prev_actions  # is lstm_input_size
        self.hidden_size = lstm_hidden_size
        # matches torch: lstm_input_size = output_dim = total_sampling_act_dim
        self.lstm_input_size = env_spec.total_sampling_act_dim
        self.output_dim = env_spec.total_sampling_act_dim

        E = env_spec.total_obs_onehot_dim
        if input_prev_actions:
            E += env_spec.total_act_onehot_dim
        self.enc_in_dim = E
        I, H, A = self.lstm_input_size, self.hidden_size, self.output_dim

        ks = jax.random.split(key, 8)
        s = 0.1
        # Base (unfused) f32 params, PyTorch weights transposed to (in, out).
        self.params = {
            "w_enc": s * jax.random.normal(ks[0], (E, I), jnp.float32),
            "b_enc": s * jax.random.normal(ks[1], (I,), jnp.float32),
            "w_ih":  s * jax.random.normal(ks[2], (I, 4 * H), jnp.float32),
            "w_hh":  s * jax.random.normal(ks[3], (H, 4 * H), jnp.float32),
            "b_ih":  s * jax.random.normal(ks[4], (4 * H,), jnp.float32),
            "b_hh":  s * jax.random.normal(ks[5], (4 * H,), jnp.float32),
            "w_out": s * jax.random.normal(ks[6], (H, A), jnp.float32),
            "b_out": s * jax.random.normal(ks[7], (A,), jnp.float32),
        }
        self._build_fused_params()

    def _build_fused_params(self):
        """Fold encoder into the gate projection; pad to lane-dense shapes."""
        p = self.params
        E, H, A = self.enc_in_dim, self.hidden_size, self.output_dim
        Kp = _round_up(E + H, 128)
        Hp = _round_up(H, 128)
        Ap = _round_up(A, 128)
        self._Kp, self._Hp, self._Ap = Kp, Hp, Ap

        # Encoder (linear) folded into the LSTM input projection.
        w_in = p["w_enc"] @ p["w_ih"]                           # (E, 4H)
        b_in = p["b_enc"] @ p["w_ih"] + p["b_ih"] + p["b_hh"]   # (4H,)

        w_gate = jnp.zeros((Kp, 4 * Hp), jnp.float32)
        b_gate = jnp.zeros((1, 4 * Hp), jnp.float32)
        for k in range(4):  # scatter each H-wide gate block into its Hp slot
            w_gate = w_gate.at[0:E, k * Hp:k * Hp + H].set(
                w_in[:, k * H:(k + 1) * H])
            w_gate = w_gate.at[E:E + H, k * Hp:k * Hp + H].set(
                p["w_hh"][:, k * H:(k + 1) * H])
            b_gate = b_gate.at[0, k * Hp:k * Hp + H].set(
                b_in[k * H:(k + 1) * H])

        w_out = jnp.zeros((Hp, Ap), jnp.float32).at[:H, :A].set(p["w_out"])
        b_out = jnp.zeros((1, Ap), jnp.float32).at[0, :A].set(p["b_out"])

        self.fused = {
            "w_gate": w_gate.astype(jnp.bfloat16),
            "b_gate": b_gate,
            "w_out": w_out.astype(jnp.bfloat16),
            "b_out": b_out,
        }

    def _encode_inputs(self, last_obs, last_act):
        pieces = []
        for o, (dim, _) in zip(last_obs, self.env_spec.obs_dims_and_types):
            pieces.append(jax.nn.one_hot(o, dim, dtype=jnp.float32))
        if self.input_prev_actions:
            for a, (dim, _) in zip(last_act, self.env_spec.act_dims_and_types):
                pieces.append(jax.nn.one_hot(a, dim, dtype=jnp.float32))
        return jnp.concatenate(pieces, axis=-1)  # (B, E)

    def forward(self, last_obs, last_act, state_h, state_c):
        """Mirrors NewPolicy.forward: returns (logits, (new_h, new_c))."""
        enc_in = self._encode_inputs(last_obs, last_act)          # (B, E)
        h0 = jnp.squeeze(state_h, 0)                              # (B, H)
        c0 = jnp.squeeze(state_c, 0)                              # (B, H)
        f = self.fused
        logits, h1, c1 = _policy_fwd_pallas(
            enc_in, h0, c0,
            f["w_gate"], f["b_gate"], f["w_out"], f["b_out"],
            H=self.hidden_size, A=self.output_dim)
        return logits, (h1[None], c1[None])


# ----------------------------------------------------------------------------
# References for correctness checks.
# ----------------------------------------------------------------------------
def _reference_exact(policy, last_obs, last_act, state_h, state_c):
    """Pure-f32 unfused math mirroring the PyTorch module (loose tol vs bf16)."""
    p = policy.params
    enc_in = policy._encode_inputs(last_obs, last_act)
    h0 = jnp.squeeze(state_h, 0)
    c0 = jnp.squeeze(state_c, 0)
    x = enc_in @ p["w_enc"] + p["b_enc"]
    gates = x @ p["w_ih"] + p["b_ih"] + h0 @ p["w_hh"] + p["b_hh"]
    H = policy.hidden_size
    i = jax.nn.sigmoid(gates[:, :H])
    f = jax.nn.sigmoid(gates[:, H:2 * H])
    g = jnp.tanh(gates[:, 2 * H:3 * H])
    o = jax.nn.sigmoid(gates[:, 3 * H:])
    c1 = f * c0 + i * g
    h1 = o * jnp.tanh(c1)
    logits = h1 @ p["w_out"] + p["b_out"]
    return logits, h1, c1


def _reference_matched(policy, last_obs, last_act, state_h, state_c):
    """Same bf16-rounded fused weights / operands as the kernel (tight tol)."""
    f = policy.fused
    E, H, A = policy.enc_in_dim, policy.hidden_size, policy.output_dim
    Hp, Kp = policy._Hp, policy._Kp
    enc_in = policy._encode_inputs(last_obs, last_act)
    h0 = jnp.squeeze(state_h, 0)
    c0 = jnp.squeeze(state_c, 0)
    B = enc_in.shape[0]
    xz = jnp.zeros((B, Kp), jnp.float32)
    xz = xz.at[:, :E].set(enc_in).at[:, E:E + H].set(h0)
    xz = xz.astype(jnp.bfloat16).astype(jnp.float32)
    gates = xz @ f["w_gate"].astype(jnp.float32) + f["b_gate"]
    i = jax.nn.sigmoid(gates[:, 0 * Hp:0 * Hp + H])
    fg = jax.nn.sigmoid(gates[:, 1 * Hp:1 * Hp + H])
    g = jnp.tanh(gates[:, 2 * Hp:2 * Hp + H])
    o = jax.nn.sigmoid(gates[:, 3 * Hp:3 * Hp + H])
    c1 = fg * c0 + i * g
    h1 = o * jnp.tanh(c1)
    h1b = h1.astype(jnp.bfloat16).astype(jnp.float32)
    logits = h1b @ f["w_out"].astype(jnp.float32)[:H, :A] + f["b_out"][:, :A]
    return logits, h1, c1


if __name__ == "__main__":
    # Small, deterministic setup.
    env_spec = EnvSpec(
        obs_dims_and_types=[(5, EnvSpec.DISCRETE), (7, EnvSpec.DISCRETE)],
        act_dims_and_types=[(4, EnvSpec.DISCRETE), (6, EnvSpec.DISCRETE)],
    )
    batch = 2
    hidden = 32

    key = jax.random.PRNGKey(0)
    k_param, k_obs0, k_obs1, k_act0, k_act1, k_h, k_c = jax.random.split(key, 7)

    policy = NewPolicyPallas(
        env_spec,
        internal_dim=hidden,
        input_prev_actions=True,
        lstm_hidden_size=hidden,
        key=k_param,
    )

    last_obs = [
        jax.random.randint(k_obs0, (batch,), 0, 5),
        jax.random.randint(k_obs1, (batch,), 0, 7),
    ]
    last_act = [
        jax.random.randint(k_act0, (batch,), 0, 4),
        jax.random.randint(k_act1, (batch,), 0, 6),
    ]
    state_h = jax.random.normal(k_h, (1, batch, hidden), jnp.float32)
    state_c = jax.random.normal(k_c, (1, batch, hidden), jnp.float32)

    logits, (new_h, new_c) = policy.forward(last_obs, last_act, state_h, state_c)
    jax.block_until_ready((logits, new_h, new_c))

    A = env_spec.total_sampling_act_dim
    assert logits.shape == (batch, A)
    assert new_h.shape == (1, batch, hidden) and new_c.shape == (1, batch, hidden)

    # Tight check against a reference using the identical bf16-rounded weights.
    m_logits, m_h, m_c = _reference_matched(
        policy, last_obs, last_act, state_h, state_c)
    assert jnp.allclose(logits, m_logits, atol=1e-3), "logits (matched ref)"
    assert jnp.allclose(new_h[0], m_h, atol=1e-3), "h1 (matched ref)"
    assert jnp.allclose(new_c[0], m_c, atol=1e-3), "c1 (matched ref)"

    # Loose check against the exact f32 unfused math (validates the W_enc@W_ih
    # fold and gate stacking; tolerance budgets the bf16 MXU operand rounding).
    e_logits, e_h, e_c = _reference_exact(
        policy, last_obs, last_act, state_h, state_c)
    assert jnp.allclose(logits, e_logits, atol=2e-2), "logits (exact ref)"
    assert jnp.allclose(new_h[0], e_h, atol=2e-2), "h1 (exact ref)"
    assert jnp.allclose(new_c[0], e_c, atol=2e-2), "c1 (exact ref)"

    print("KERNEL_OK")
</pallas_src>

<mosaic_0001>
module attributes {stable_mosaic.version = 11 : i64} {
  func.func @_policy_fwd_kernel(%arg0: memref<2x128xbf16, #tpu.memory_space<vmem>>, %arg1: memref<128x512xbf16, #tpu.memory_space<vmem>>, %arg2: memref<1x512xf32, #tpu.memory_space<vmem>>, %arg3: memref<2x128xf32, #tpu.memory_space<vmem>>, %arg4: memref<128x128xbf16, #tpu.memory_space<vmem>>, %arg5: memref<1x128xf32, #tpu.memory_space<vmem>>, %arg6: memref<2x128xf32, #tpu.memory_space<vmem>>, %arg7: memref<2x128xf32, #tpu.memory_space<vmem>>, %arg8: memref<2x128xf32, #tpu.memory_space<vmem>>) attributes {dimension_semantics = [], scalar_prefetch = 0 : i64, scratch_operands = 0 : i64, tpu.core_type = #tpu.core_type<tc>} {
    %c0 = arith.constant 0 : index
    %c0_0 = arith.constant 0 : index
    %0 = vector.load %arg0[%c0, %c0_0] : memref<2x128xbf16, #tpu.memory_space<vmem>>, vector<2x128xbf16>
    %c0_1 = arith.constant 0 : index
    %c0_2 = arith.constant 0 : index
    %1 = vector.load %arg1[%c0_1, %c0_2] : memref<128x512xbf16, #tpu.memory_space<vmem>>, vector<128x512xbf16>
    %cst = arith.constant dense<0.000000e+00> : vector<2x512xf32>
    %2 = tpu.matmul %0, %1, %cst {dimension_numbers = #tpu.dot_dimension_numbers<[1], [0], [0], [1], [0, 0, 1, 1], [], []>} : vector<2x128xbf16>, vector<128x512xbf16>, vector<2x512xf32> -> vector<2x512xf32>
    %c0_3 = arith.constant 0 : index
    %c0_4 = arith.constant 0 : index
    %3 = vector.load %arg2[%c0_3, %c0_4] : memref<1x512xf32, #tpu.memory_space<vmem>>, vector<1x512xf32>
    %4 = vector.broadcast %3 : vector<1x512xf32> to vector<2x512xf32>
    %5 = arith.addf %2, %4 : vector<2x512xf32>
    %6 = vector.extract_strided_slice %5 {offsets = [0, 0], sizes = [2, 128], strides = [1, 1]} : vector<2x512xf32> to vector<2x128xf32>
    %7 = arith.negf %6 : vector<2x128xf32>
    %8 = math.exp %7 : vector<2x128xf32>
    %cst_5 = arith.constant 1.000000e+00 : f32
    %9 = vector.broadcast %cst_5 : f32 to vector<2x128xf32>
    %10 = arith.addf %9, %8 : vector<2x128xf32>
    %11 = arith.divf %9, %10 : vector<2x128xf32>
    %12 = vector.extract_strided_slice %5 {offsets = [0, 128], sizes = [2, 128], strides = [1, 1]} : vector<2x512xf32> to vector<2x128xf32>
    %13 = arith.negf %12 : vector<2x128xf32>
    %14 = math.exp %13 : vector<2x128xf32>
    %cst_6 = arith.constant 1.000000e+00 : f32
    %15 = vector.broadcast %cst_6 : f32 to vector<2x128xf32>
    %16 = arith.addf %15, %14 : vector<2x128xf32>
    %17 = arith.divf %15, %16 : vector<2x128xf32>
    %18 = vector.extract_strided_slice %5 {offsets = [0, 256], sizes = [2, 128], strides = [1, 1]} : vector<2x512xf32> to vector<2x128xf32>
    %19 = math.tanh %18 : vector<2x128xf32>
    %20 = vector.extract_strided_slice %5 {offsets = [0, 384], sizes = [2, 128], strides = [1, 1]} : vector<2x512xf32> to vector<2x128xf32>
    %21 = arith.negf %20 : vector<2x128xf32>
    %22 = math.exp %21 : vector<2x128xf32>
    %cst_7 = arith.constant 1.000000e+00 : f32
    %23 = vector.broadcast %cst_7 : f32 to vector<2x128xf32>
    %24 = arith.addf %23, %22 : vector<2x128xf32>
    %25 = arith.divf %23, %24 : vector<2x128xf32>
    %c0_8 = arith.constant 0 : index
    %c0_9 = arith.constant 0 : index
    %26 = vector.load %arg3[%c0_8, %c0_9] : memref<2x128xf32, #tpu.memory_space<vmem>>, vector<2x128xf32>
    %27 = arith.mulf %17, %26 : vector<2x128xf32>
    %28 = arith.mulf %11, %19 : vector<2x128xf32>
    %29 = arith.addf %27, %28 : vector<2x128xf32>
    %30 = math.tanh %29 : vector<2x128xf32>
    %31 = arith.mulf %25, %30 : vector<2x128xf32>
    %32 = arith.truncf %31 : vector<2x128xf32> to vector<2x128xbf16>
    %c0_10 = arith.constant 0 : index
    %c0_11 = arith.constant 0 : index
    %33 = vector.load %arg4[%c0_10, %c0_11] : memref<128x128xbf16, #tpu.memory_space<vmem>>, vector<128x128xbf16>
    %cst_12 = arith.constant dense<0.000000e+00> : vector<2x128xf32>
    %34 = tpu.matmul %32, %33, %cst_12 {dimension_numbers = #tpu.dot_dimension_numbers<[1], [0], [0], [1], [0, 0, 1, 1], [], []>} : vector<2x128xbf16>, vector<128x128xbf16>, vector<2x128xf32> -> vector<2x128xf32>
    %c0_13 = arith.constant 0 : index
    %c0_14 = arith.constant 0 : index
    %35 = vector.load %arg5[%c0_13, %c0_14] : memref<1x128xf32, #tpu.memory_space<vmem>>, vector<1x128xf32>
    %36 = vector.broadcast %35 : vector<1x128xf32> to vector<2x128xf32>
    %37 = arith.addf %34, %36 : vector<2x128xf32>
    %c0_15 = arith.constant 0 : index
    %c0_16 = arith.constant 0 : index
    %38 = vector.load %arg6[%c0_15, %c0_16] : memref<2x128xf32, #tpu.memory_space<vmem>>, vector<2x128xf32>
    tpu.vector_store %arg6[%c0_15, %c0_16], %37 {strides = array<i32>} : memref<2x128xf32, #tpu.memory_space<vmem>>, vector<2x128xf32>,
    %c0_17 = arith.constant 0 : index
    %c0_18 = arith.constant 0 : index
    %39 = vector.load %arg7[%c0_17, %c0_18] : memref<2x128xf32, #tpu.memory_space<vmem>>, vector<2x128xf32>
    tpu.vector_store %arg7[%c0_17, %c0_18], %31 {strides = array<i32>} : memref<2x128xf32, #tpu.memory_space<vmem>>, vector<2x128xf32>,
    %c0_19 = arith.constant 0 : index
    %c0_20 = arith.constant 0 : index
    %40 = vector.load %arg8[%c0_19, %c0_20] : memref<2x128xf32, #tpu.memory_space<vmem>>, vector<2x128xf32>
    tpu.vector_store %arg8[%c0_19, %c0_20], %29 {strides = array<i32>} : memref<2x128xf32, #tpu.memory_space<vmem>>, vector<2x128xf32>,
    return
  }
}

</mosaic_0001>

<llo_original>
// kernel: _policy_fwd_pallas.1
$region0: #{_policy_fwd_pallas.1}
  #allocation0 [shape = 'u32[]', space=smem, size = 0x4, offset = 0x4, fixed_abs, tag = 'smem constant byte address 0x4 - core index']
  #allocation1 [shape = 'u32[144,128]{1,0:T(1,128)}', space=vmem, size = 0x12000, scoped, tag = 'internal scratch']
  %s0 = inlined_call_operand.hbm [shape: bf16[2,128], index: 0, kind: input, shape index: {}]
  %s1 = inlined_call_operand.hbm [shape: bf16[128,512], index: 1, kind: input, shape index: {}]
  %s2 = inlined_call_operand.hbm [shape: f32[1,512], index: 2, kind: input, shape index: {}]
  %s3 = inlined_call_operand.hbm [shape: f32[2,128], index: 3, kind: input, shape index: {}, may-alias: {3,8}]
  %s4 = inlined_call_operand.hbm [shape: bf16[128,128], index: 4, kind: input, shape index: {}]
  %s5 = inlined_call_operand.hbm [shape: f32[1,128], index: 5, kind: input, shape index: {}]
  %s6 = inlined_call_operand.hbm [shape: f32[2,128], index: 6, kind: output, shape index: {0}]
  %s7 = inlined_call_operand.hbm [shape: f32[2,128], index: 7, kind: output, shape index: {1}]
  %s8 = inlined_call_operand.hbm [shape: f32[2,128], index: 8, kind: output, shape index: {2}, may-alias: {3,8}]
  %9 = xla_tuple %s6, %s7, %s8
  %s10 = sld [smem:[#allocation0]]
  $region74: #{_policy_fwd_pallas.1} parent=0
    _
  %s12 = ssub.s32 1, %s10
  %s13 = scalar_select 0, %s12, %s10
  $region1: #{_policy_fwd_pallas.1} parent=0
    #allocation2 [shape = 'u8[512]{0}', space=vmem, size = 0x400, scoped, tag = 'input window, operand 0, single buffered']
    #allocation3 [shape = 's32[1]{0}', space=sflag, size = 0x4, scoped, tag = 'scoped memory for _policy_fwd_pallas.1']
    #allocation4 [shape = 's32[1]{0}', space=sflag, size = 0x4, scoped, tag = 'scoped memory for _policy_fwd_pallas.1']
    #allocation5 [shape = 'u8[131072]{0}', space=vmem, size = 0x20000, scoped, tag = 'input window, operand 1, single buffered']
    #allocation6 [shape = 's32[1]{0}', space=sflag, size = 0x4, scoped, tag = 'scoped memory for _policy_fwd_pallas.1']
    #allocation7 [shape = 'u8[2048]{0}', space=vmem, size = 0x800, scoped, tag = 'input window, operand 2, single buffered']
    #allocation8 [shape = 'u8[1024]{0}', space=vmem, size = 0x400, scoped, tag = 'input window, operand 3, single buffered']
    #allocation9 [shape = 's32[1]{0}', space=sflag, size = 0x4, scoped, tag = 'scoped memory for _policy_fwd_pallas.1']
    #allocation10 [shape = 'u8[32768]{0}', space=vmem, size = 0x8000, scoped, tag = 'input window, operand 4, single buffered']
    #allocation11 [shape = 'u8[512]{0}', space=vmem, size = 0x400, scoped, tag = 'input window, operand 5, single buffered']
    #allocation12 [shape = 's32[1]{0}', space=sflag, size = 0x4, scoped, tag = 'scoped memory for _policy_fwd_pallas.1']
    #allocation13 [shape = 'u8[1024]{0}', space=vmem, size = 0x400, scoped, tag = 'output window, operand 0, single buffered']
    #allocation14 [shape = 'u8[1024]{0}', space=vmem, size = 0x400, scoped, tag = 'output window, operand 1, single buffered']
    #allocation15 [shape = 's32[1]{0}', space=sflag, size = 0x4, scoped, tag = 'scoped memory for _policy_fwd_pallas.1']
    #allocation16 [shape = 'u8[1024]{0}', space=vmem, size = 0x400, scoped, tag = 'output window, operand 2, single buffered']
    %14 = vsyncpa [#allocation3], 0
    %15 = vsyncpa [#allocation6], 0
    %16 = vsyncpa [#allocation9], 0
    %17 = vsyncpa [#allocation12], 0
    %18 = vsyncpa [#allocation4], 0
    %19 = vsyncpa [#allocation15], 0
    // Predicated region
    $region2: #{_policy_fwd_pallas.1} parent=1 // pred_check
      _
    $region3: #{_policy_fwd_pallas.1} parent=1 // pred_check_branch
      %21 = sbr.rel (0) target = $region5
    $region4: #{_policy_fwd_pallas.1} parent=1 // pred_region
      %s23 = ssub.s32 16, 16
      %24 = vsyncadd [#allocation3], %s23
      %s26 = sshll.u32 [#allocation2], 4
      %s27 = int_to_ptr.vmem [resolvable:$true] %s26
      %29 = dma.hbm_to_vmem [thread:$0]  %s0, 16, %s27, [#allocation3]
    $region5: #{_policy_fwd_pallas.1} parent=1 // pred_fallthru
      _
    // Predicated region
    $region6: #{_policy_fwd_pallas.1} parent=1 // pred_check
      _
    $region7: #{_policy_fwd_pallas.1} parent=1 // pred_check_branch
      %31 = sbr.rel (0) target = $region9
    $region8: #{_policy_fwd_pallas.1} parent=1 // pred_region
      %s33 = ssub.s32 4096, 4096
      %34 = vsyncadd [#allocation6], %s33
      %s35 = sshll.u32 [#allocation5], 4
      %s36 = int_to_ptr.vmem [resolvable:$true] %s35
      %41 = dma.hbm_to_vmem [thread:$0]  %s1, 4096, %s36, [#allocation6], 256, 256, 16
    $region9: #{_policy_fwd_pallas.1} parent=1 // pred_fallthru
      _
    // Predicated region
    $region10: #{_policy_fwd_pallas.1} parent=1 // pred_check
      _
    $region11: #{_policy_fwd_pallas.1} parent=1 // pred_check_branch
      %43 = sbr.rel (0) target = $region13
    $region12: #{_policy_fwd_pallas.1} parent=1 // pred_region
      %s45 = ssub.s32 64, 64
      %46 = vsyncadd [#allocation6], %s45
      %s48 = sshll.u32 [#allocation7], 4
      %s49 = int_to_ptr.vmem [resolvable:$true] %s48
      %51 = dma.hbm_to_vmem [thread:$0]  %s2, 64, %s49, [#allocation6]
    $region13: #{_policy_fwd_pallas.1} parent=1 // pred_fallthru
      _
    // Predicated region
    $region14: #{_policy_fwd_pallas.1} parent=1 // pred_check
      _
    $region15: #{_policy_fwd_pallas.1} parent=1 // pred_check_branch
      %53 = sbr.rel (0) target = $region17
    $region16: #{_policy_fwd_pallas.1} parent=1 // pred_region
      %s55 = ssub.s32 32, 32
      %56 = vsyncadd [#allocation9], %s55
      %s58 = sshll.u32 [#allocation8], 4
      %s59 = int_to_ptr.vmem [resolvable:$true] %s58
      %61 = dma.hbm_to_vmem [thread:$0]  %s3, 32, %s59, [#allocation9]
    $region17: #{_policy_fwd_pallas.1} parent=1 // pred_fallthru
      _
    // Predicated region
    $region18: #{_policy_fwd_pallas.1} parent=1 // pred_check
      _
    $region19: #{_policy_fwd_pallas.1} parent=1 // pred_check_branch
      %63 = sbr.rel (0) target = $region21
    $region20: #{_policy_fwd_pallas.1} parent=1 // pred_region
      %s65 = ssub.s32 1024, 1024
      %66 = vsyncadd [#allocation9], %s65
      %s67 = sshll.u32 [#allocation10], 4
      %s68 = int_to_ptr.vmem [resolvable:$true] %s67
      %73 = dma.hbm_to_vmem [thread:$0]  %s4, 1024, %s68, [#allocation9], 64, 64, 4
    $region21: #{_policy_fwd_pallas.1} parent=1 // pred_fallthru
      _
    // Predicated region
    $region22: #{_policy_fwd_pallas.1} parent=1 // pred_check
      _
    $region23: #{_policy_fwd_pallas.1} parent=1 // pred_check_branch
      %75 = sbr.rel (0) target = $region25
    $region24: #{_policy_fwd_pallas.1} parent=1 // pred_region
      %s77 = ssub.s32 16, 16
      %78 = vsyncadd [#allocation12], %s77
      %s80 = sshll.u32 [#allocation11], 4
      %s81 = int_to_ptr.vmem [resolvable:$true] %s80
      %83 = dma.hbm_to_vmem [thread:$0]  %s5, 16, %s81, [#allocation12]
    $region25: #{_policy_fwd_pallas.1} parent=1 // pred_fallthru
      _
    // Predicated region
    $region26: #{_policy_fwd_pallas.1} parent=1 // pred_check
      _
    $region27: #{_policy_fwd_pallas.1} parent=1 // pred_check_branch
      %85 = sbr.rel (0) target = $region29
    $region28: #{_policy_fwd_pallas.1} parent=1 // pred_region
      %86 = dma.done [#allocation3], 16
    $region29: #{_policy_fwd_pallas.1} parent=1 // pred_fallthru
      _
    // Predicated region
    $region30: #{_policy_fwd_pallas.1} parent=1 // pred_check
      _
    $region31: #{_policy_fwd_pallas.1} parent=1 // pred_check_branch
      %88 = sbr.rel (0) target = $region33
    $region32: #{_policy_fwd_pallas.1} parent=1 // pred_region
      %89 = dma.done [#allocation6], 4096
    $region33: #{_policy_fwd_pallas.1} parent=1 // pred_fallthru
      _
    // Predicated region
    $region34: #{_policy_fwd_pallas.1} parent=1 // pred_check
      _
    $region35: #{_policy_fwd_pallas.1} parent=1 // pred_check_branch
      %91 = sbr.rel (0) target = $region37
    $region36: #{_policy_fwd_pallas.1} parent=1 // pred_region
      %92 = dma.done [#allocation6], 64
    $region37: #{_policy_fwd_pallas.1} parent=1 // pred_fallthru
      _
    // Predicated region
    $region38: #{_policy_fwd_pallas.1} parent=1 // pred_check
      _
    $region39: #{_policy_fwd_pallas.1} parent=1 // pred_check_branch
      %94 = sbr.rel (0) target = $region41
    $region40: #{_policy_fwd_pallas.1} parent=1 // pred_region
      %95 = dma.done [#allocation9], 32
    $region41: #{_policy_fwd_pallas.1} parent=1 // pred_fallthru
      _
    // Predicated region
    $region42: #{_policy_fwd_pallas.1} parent=1 // pred_check
      _
    $region43: #{_policy_fwd_pallas.1} parent=1 // pred_check_branch
      %97 = sbr.rel (0) target = $region45
    $region44: #{_policy_fwd_pallas.1} parent=1 // pred_region
      %98 = dma.done [#allocation9], 1024
    $region45: #{_policy_fwd_pallas.1} parent=1 // pred_fallthru
      _
    // Predicated region
    $region46: #{_policy_fwd_pallas.1} parent=1 // pred_check
      _
    $region47: #{_policy_fwd_pallas.1} parent=1 // pred_check_branch
      %100 = sbr.rel (0) target = $region49
    $region48: #{_policy_fwd_pallas.1} parent=1 // pred_region
      %101 = dma.done [#allocation12], 16
    $region49: #{_policy_fwd_pallas.1} parent=1 // pred_fallthru
      _
    %v103 = vld [vmem:[#allocation2] sm:$0x1]
    %v104 = vld [vmem:[#allocation5] sm:$0xff]
    %v105 = vld [vmem:[#allocation5 + $0x8] sm:$0xff]
    %v106 = vld [vmem:[#allocation5 + $0x10] sm:$0xff]
    %v107 = vld [vmem:[#allocation5 + $0x18] sm:$0xff]
    %v108 = vld [vmem:[#allocation5 + $0x20] sm:$0xff]
    %v109 = vld [vmem:[#allocation5 + $0x28] sm:$0xff]
    %v110 = vld [vmem:[#allocation5 + $0x30] sm:$0xff]
    %v111 = vld [vmem:[#allocation5 + $0x38] sm:$0xff]
    %v112 = vld [vmem:[#allocation5 + $0x40] sm:$0xff]
    %v113 = vld [vmem:[#allocation5 + $0x48] sm:$0xff]
    %v114 = vld [vmem:[#allocation5 + $0x50] sm:$0xff]
    %v115 = vld [vmem:[#allocation5 + $0x58] sm:$0xff]
    %v116 = vld [vmem:[#allocation5 + $0x60] sm:$0xff]
    %v117 = vld [vmem:[#allocation5 + $0x68] sm:$0xff]
    %v118 = vld [vmem:[#allocation5 + $0x70] sm:$0xff]
    %v119 = vld [vmem:[#allocation5 + $0x78] sm:$0xff]
    %v120 = vld [vmem:[#allocation5 + $0x80] sm:$0xff]
    %v121 = vld [vmem:[#allocation5 + $0x88] sm:$0xff]
    %v122 = vld [vmem:[#allocation5 + $0x90] sm:$0xff]
    %v123 = vld [vmem:[#allocation5 + $0x98] sm:$0xff]
    %v124 = vld [vmem:[#allocation5 + $0xa0] sm:$0xff]
    %v125 = vld [vmem:[#allocation5 + $0xa8] sm:$0xff]
    %v126 = vld [vmem:[#allocation5 + $0xb0] sm:$0xff]
    %v127 = vld [vmem:[#allocation5 + $0xb8] sm:$0xff]
    %v128 = vld [vmem:[#allocation5 + $0xc0] sm:$0xff]
    %v129 = vld [vmem:[#allocation5 + $0xc8] sm:$0xff]
    %v130 = vld [vmem:[#allocation5 + $0xd0] sm:$0xff]
    %v131 = vld [vmem:[#allocation5 + $0xd8] sm:$0xff]
    %v132 = vld [vmem:[#allocation5 + $0xe0] sm:$0xff]
    %v133 = vld [vmem:[#allocation5 + $0xe8] sm:$0xff]
    %v134 = vld [vmem:[#allocation5 + $0xf0] sm:$0xff]
    %v135 = vld [vmem:[#allocation5 + $0xf8] sm:$0xff]
    %v136 = vld [vmem:[#allocation7] sm:$0xf]
    %v138 = vlaneseq
    %v139 = vshrl.u32 %v138, 7
    %v140 = vsub.s32 0, %v139
    %v141 = vrot.slane %v136, %v140
    %v142 = vlaneseq
    %v143 = vshrl.u32 %v142, 7
    %v144 = vsub.s32 1, %v143
    %v145 = vrot.slane %v136, %v144
    %v146 = vlaneseq
    %v147 = vshrl.u32 %v146, 7
    %v148 = vsub.s32 2, %v147
    %v149 = vrot.slane %v136, %v148
    %v150 = vlaneseq
    %v151 = vshrl.u32 %v150, 7
    %v152 = vsub.s32 3, %v151
    %v153 = vrot.slane %v136, %v152
    %v190 = vunpack.c.l.b16 %v104
    %v191 = vunpack.c.h.b16 %v104
    %v192 = vunpack.c.l.b16 %v105
    %v193 = vunpack.c.h.b16 %v105
    %v194 = vunpack.c.l.b16 %v106
    %v195 = vunpack.c.h.b16 %v106
    %v196 = vunpack.c.l.b16 %v107
    %v197 = vunpack.c.h.b16 %v107
    %v198 = vunpack.c.l.b16 %v108
    %v199 = vunpack.c.h.b16 %v108
    %v200 = vunpack.c.l.b16 %v109
    %v201 = vunpack.c.h.b16 %v109
    %v202 = vunpack.c.l.b16 %v110
    %v203 = vunpack.c.h.b16 %v110
    %v204 = vunpack.c.l.b16 %v111
    %v205 = vunpack.c.h.b16 %v111
    %v206 = vunpack.c.l.b16 %v112
    %v207 = vunpack.c.h.b16 %v112
    %v208 = vunpack.c.l.b16 %v113
    %v209 = vunpack.c.h.b16 %v113
    %v210 = vunpack.c.l.b16 %v114
    %v211 = vunpack.c.h.b16 %v114
    %v212 = vunpack.c.l.b16 %v115
    %v213 = vunpack.c.h.b16 %v115
    %v214 = vunpack.c.l.b16 %v116
    %v215 = vunpack.c.h.b16 %v116
    %v216 = vunpack.c.l.b16 %v117
    %v217 = vunpack.c.h.b16 %v117
    %v218 = vunpack.c.l.b16 %v118
    %v219 = vunpack.c.h.b16 %v118
    %v220 = vunpack.c.l.b16 %v119
    %v221 = vunpack.c.h.b16 %v119
    %v222 = vunpack.c.l.b16 %v120
    %v223 = vunpack.c.h.b16 %v120
    %v224 = vunpack.c.l.b16 %v121
    %v225 = vunpack.c.h.b16 %v121
    %v226 = vunpack.c.l.b16 %v122
    %v227 = vunpack.c.h.b16 %v122
    %v228 = vunpack.c.l.b16 %v123
    %v229 = vunpack.c.h.b16 %v123
    %v230 = vunpack.c.l.b16 %v124
    %v231 = vunpack.c.h.b16 %v124
    %v232 = vunpack.c.l.b16 %v125
    %v233 = vunpack.c.h.b16 %v125
    %v234 = vunpack.c.l.b16 %v126
    %v235 = vunpack.c.h.b16 %v126
    %v236 = vunpack.c.l.b16 %v127
    %v237 = vunpack.c.h.b16 %v127
    %v238 = vunpack.c.l.b16 %v128
    %v239 = vunpack.c.h.b16 %v128
    %v240 = vunpack.c.l.b16 %v129
    %v241 = vunpack.c.h.b16 %v129
    %v242 = vunpack.c.l.b16 %v130
    %v243 = vunpack.c.h.b16 %v130
    %v244 = vunpack.c.l.b16 %v131
    %v245 = vunpack.c.h.b16 %v131
    %v246 = vunpack.c.l.b16 %v132
    %v247 = vunpack.c.h.b16 %v132
    %v248 = vunpack.c.l.b16 %v133
    %v249 = vunpack.c.h.b16 %v133
    %v250 = vunpack.c.l.b16 %v134
    %v251 = vunpack.c.h.b16 %v134
    %v252 = vunpack.c.l.b16 %v135
    %v253 = vunpack.c.h.b16 %v135
    %v254 = vpack.c.b16 %v194, %v190
    %v255 = vpack.c.b16 %v195, %v191
    %v256 = vpack.c.b16 %v196, %v192
    %v257 = vpack.c.b16 %v197, %v193
    %v258 = vpack.c.b16 %v202, %v198
    %v259 = vpack.c.b16 %v203, %v199
    %v260 = vpack.c.b16 %v204, %v200
    %v261 = vpack.c.b16 %v205, %v201
    %v262 = vpack.c.b16 %v210, %v206
    %v263 = vpack.c.b16 %v211, %v207
    %v264 = vpack.c.b16 %v212, %v208
    %v265 = vpack.c.b16 %v213, %v209
    %v266 = vpack.c.b16 %v218, %v214
    %v267 = vpack.c.b16 %v219, %v215
    %v268 = vpack.c.b16 %v220, %v216
    %v269 = vpack.c.b16 %v221, %v217
    %v270 = vpack.c.b16 %v226, %v222
    %v271 = vpack.c.b16 %v227, %v223
    %v272 = vpack.c.b16 %v228, %v224
    %v273 = vpack.c.b16 %v229, %v225
    %v274 = vpack.c.b16 %v234, %v230
    %v275 = vpack.c.b16 %v235, %v231
    %v276 = vpack.c.b16 %v236, %v232
    %v277 = vpack.c.b16 %v237, %v233
    %v278 = vpack.c.b16 %v242, %v238
    %v279 = vpack.c.b16 %v243, %v239
    %v280 = vpack.c.b16 %v244, %v240
    %v281 = vpack.c.b16 %v245, %v241
    %v282 = vpack.c.b16 %v250, %v246
    %v283 = vpack.c.b16 %v251, %v247
    %v284 = vpack.c.b16 %v252, %v248
    %v285 = vpack.c.b16 %v253, %v249
    %318 = vmatprep.subr.bf16.mxu0 %v255
    %319 = vmatpush1.bf16.msra.mxu0 %v254
    %320 = vmatprep.subr.bf16.mxu0 %v259
    %321 = vmatpush1.bf16.msra.mxu0 %v258
    %322 = vmatprep.subr.bf16.mxu0 %v263
    %323 = vmatpush1.bf16.msra.mxu0 %v262
    %324 = vmatprep.subr.bf16.mxu0 %v267
    %325 = vmatpush1.bf16.msra.mxu0 %v266
    %326 = vmatprep.subr.bf16.mxu0 %v271
    %327 = vmatpush1.bf16.msra.mxu0 %v270
    %328 = vmatprep.subr.bf16.mxu0 %v275
    %329 = vmatpush1.bf16.msra.mxu0 %v274
    %330 = vmatprep.subr.bf16.mxu0 %v279
    %331 = vmatpush1.bf16.msra.mxu0 %v278
    %332 = vmatprep.subr.bf16.mxu0 %v283
    %333 = vmatpush1.bf16.msra.mxu0 %v282
    %334 = vmatprep.subr.bf16.mxu0 0
    %335 = vmatpush1.bf16.msra.mxu0 0
    %336 = vmatprep.subr.bf16.mxu0 0
    %337 = vmatpush1.bf16.msra.mxu0 0
    %338 = vmatprep.subr.bf16.mxu0 0
    %339 = vmatpush1.bf16.msra.mxu0 0
    %340 = vmatprep.subr.bf16.mxu0 0
    %341 = vmatpush1.bf16.msra.mxu0 0
    %342 = vmatprep.subr.bf16.mxu0 0
    %343 = vmatpush1.bf16.msra.mxu0 0
    %344 = vmatprep.subr.bf16.mxu0 0
    %345 = vmatpush1.bf16.msra.mxu0 0
    %346 = vmatprep.subr.bf16.mxu0 0
    %347 = vmatpush1.bf16.msra.mxu0 0
    %348 = vmatprep.subr.bf16.mxu0 0
    %349 = vmatpush1.bf16.msra.mxu0 0
    %350 = vmatprep.mubr.bf16.mxu0 0
    %351 = vmatmul.mubr.bf16.gmra.mrb[0].mxu0 %v103
    %v352 = vpop.f32.mrb[0].mxu0
    %v353 = vadd.f32 %v141, %v352
    %v354 = vpop.f32.mrb[0].mxu0
    %v355 = vadd.f32 %v145, %v354
    %v356 = vpop.f32.mrb[0].mxu0
    %v357 = vpop.f32.mrb[0].mxu0
    %358 = vdwg.mxu0
    %359 = vmatprep.subr.bf16.mxu0 %v257
    %360 = vmatpush1.bf16.msra.mxu0 %v256
    %361 = vmatprep.subr.bf16.mxu0 %v261
    %362 = vmatpush1.bf16.msra.mxu0 %v260
    %363 = vmatprep.subr.bf16.mxu0 %v265
    %364 = vmatpush1.bf16.msra.mxu0 %v264
    %365 = vmatprep.subr.bf16.mxu0 %v269
    %366 = vmatpush1.bf16.msra.mxu0 %v268
    %367 = vmatprep.subr.bf16.mxu0 %v273
    %368 = vmatpush1.bf16.msra.mxu0 %v272
    %369 = vmatprep.subr.bf16.mxu0 %v277
    %370 = vmatpush1.bf16.msra.mxu0 %v276
    %371 = vmatprep.subr.bf16.mxu0 %v281
    %372 = vmatpush1.bf16.msra.mxu0 %v280
    %373 = vmatprep.subr.bf16.mxu0 %v285
    %374 = vmatpush1.bf16.msra.mxu0 %v284
    %375 = vmatprep.subr.bf16.mxu0 0
    %376 = vmatpush1.bf16.msra.mxu0 0
    %377 = vmatprep.subr.bf16.mxu0 0
    %378 = vmatpush1.bf16.msra.mxu0 0
    %379 = vmatprep.subr.bf16.mxu0 0
    %380 = vmatpush1.bf16.msra.mxu0 0
    %381 = vmatprep.subr.bf16.mxu0 0
    %382 = vmatpush1.bf16.msra.mxu0 0
    %383 = vmatprep.subr.bf16.mxu0 0
    %384 = vmatpush1.bf16.msra.mxu0 0
    %385 = vmatprep.subr.bf16.mxu0 0
    %386 = vmatpush1.bf16.msra.mxu0 0
    %387 = vmatprep.subr.bf16.mxu0 0
    %388 = vmatpush1.bf16.msra.mxu0 0
    %389 = vmatprep.subr.bf16.mxu0 0
    %390 = vmatpush1.bf16.msra.mxu0 0
    %391 = vmatprep.mubr.bf16.mxu0 0
    %392 = vmatmul.mubr.bf16.gmra.mrb[0].mxu0 %v103
    %v393 = vpop.f32.mrb[0].mxu0
    %v394 = vadd.f32 %v149, %v393
    %v395 = vpop.f32.mrb[0].mxu0
    %v396 = vadd.f32 %v153, %v395
    %v397 = vpop.f32.mrb[0].mxu0
    %v398 = vpop.f32.mrb[0].mxu0
    %399 = vdwg.mxu0
    %v400 = vxor.u32 %v353, 2147483648
    %v401 = vmul.f32 %v400, 1.442695
    %v402 = vpow.pop %v401
    %v403 = vadd.f32 %v402, 1.0
    %v404 = vrcp.pop %v403
    %v405 = vmul.f32 1.0, %v404
    %v406 = vxor.u32 %v355, 2147483648
    %v407 = vmul.f32 %v406, 1.442695
    %v408 = vpow.pop %v407
    %v409 = vadd.f32 %v408, 1.0
    %v410 = vrcp.pop %v409
    %v411 = vmul.f32 1.0, %v410
    %v412 = vtanh.pop %v394
    %v413 = vxor.u32 %v396, 2147483648
    %v414 = vmul.f32 %v413, 1.442695
    %v415 = vpow.pop %v414
    %v416 = vadd.f32 %v415, 1.0
    %v417 = vrcp.pop %v416
    %v418 = vmul.f32 1.0, %v417
    %v419 = vld [vmem:[#allocation8] sm:$0x3]
    %v420 = vmul.f32 %v411, %v419
    %v421 = vmul.f32 %v405, %v412
    %v422 = vadd.f32 %v420, %v421
    %v423 = vtanh.pop %v422
    %v424 = vmul.f32 %v418, %v423
    %v425 = vpack.c.bf16 %v424, %v424
    %v426 = vld [vmem:[#allocation10] sm:$0xf]
    %v427 = vld [vmem:[#allocation10 + $0x4] sm:$0xf]
    %v428 = vld [vmem:[#allocation10 + $0x8] sm:$0xf]
    %v429 = vld [vmem:[#allocation10 + $0xc] sm:$0xf]
    %v430 = vld [vmem:[#allocation10 + $0x10] sm:$0xf]
    %v431 = vld [vmem:[#allocation10 + $0x14] sm:$0xf]
    %v432 = vld [vmem:[#allocation10 + $0x18] sm:$0xf]
    %v433 = vld [vmem:[#allocation10 + $0x1c] sm:$0xf]
    %v434 = vld [vmem:[#allocation10 + $0x20] sm:$0xf]
    %v435 = vld [vmem:[#allocation10 + $0x24] sm:$0xf]
    %v436 = vld [vmem:[#allocation10 + $0x28] sm:$0xf]
    %v437 = vld [vmem:[#allocation10 + $0x2c] sm:$0xf]
    %v438 = vld [vmem:[#allocation10 + $0x30] sm:$0xf]
    %v439 = vld [vmem:[#allocation10 + $0x34] sm:$0xf]
    %v440 = vld [vmem:[#allocation10 + $0x38] sm:$0xf]
    %v441 = vld [vmem:[#allocation10 + $0x3c] sm:$0xf]
    %v442 = vld [vmem:[#allocation11] sm:$0x1]
    %v444 = vlaneseq
    %v445 = vshrl.u32 %v444, 7
    %v446 = vsub.s32 0, %v445
    %v447 = vrot.slane %v442, %v446
    %v465 = vunpack.c.l.b16 %v426
    %v466 = vunpack.c.l.b16 %v427
    %v467 = vunpack.c.l.b16 %v428
    %v468 = vunpack.c.l.b16 %v429
    %v469 = vunpack.c.l.b16 %v430
    %v470 = vunpack.c.l.b16 %v431
    %v471 = vunpack.c.l.b16 %v432
    %v472 = vunpack.c.l.b16 %v433
    %v473 = vunpack.c.l.b16 %v434
    %v474 = vunpack.c.l.b16 %v435
    %v475 = vunpack.c.l.b16 %v436
    %v476 = vunpack.c.l.b16 %v437
    %v477 = vunpack.c.l.b16 %v438
    %v478 = vunpack.c.l.b16 %v439
    %v479 = vunpack.c.l.b16 %v440
    %v480 = vunpack.c.l.b16 %v441
    %v481 = vpack.c.b16 %v466, %v465
    %v482 = vpack.c.b16 %v468, %v467
    %v483 = vpack.c.b16 %v470, %v469
    %v484 = vpack.c.b16 %v472, %v471
    %v485 = vpack.c.b16 %v474, %v473
    %v486 = vpack.c.b16 %v476, %v475
    %v487 = vpack.c.b16 %v478, %v477
    %v488 = vpack.c.b16 %v480, %v479
    %497 = vmatprep.subr.bf16.mxu0 0
    %498 = vmatpush1.bf16.msra.mxu0 %v481
    %499 = vmatprep.subr.bf16.mxu0 0
    %500 = vmatpush1.bf16.msra.mxu0 %v482
    %501 = vmatprep.subr.bf16.mxu0 0
    %502 = vmatpush1.bf16.msra.mxu0 %v483
    %503 = vmatprep.subr.bf16.mxu0 0
    %504 = vmatpush1.bf16.msra.mxu0 %v484
    %505 = vmatprep.subr.bf16.mxu0 0
    %506 = vmatpush1.bf16.msra.mxu0 %v485
    %507 = vmatprep.subr.bf16.mxu0 0
    %508 = vmatpush1.bf16.msra.mxu0 %v486
    %509 = vmatprep.subr.bf16.mxu0 0
    %510 = vmatpush1.bf16.msra.mxu0 %v487
    %511 = vmatprep.subr.bf16.mxu0 0
    %512 = vmatpush1.bf16.msra.mxu0 %v488
    %513 = vmatprep.subr.bf16.mxu0 0
    %514 = vmatpush1.bf16.msra.mxu0 0
    %515 = vmatprep.subr.bf16.mxu0 0
    %516 = vmatpush1.bf16.msra.mxu0 0
    %517 = vmatprep.subr.bf16.mxu0 0
    %518 = vmatpush1.bf16.msra.mxu0 0
    %519 = vmatprep.subr.bf16.mxu0 0
    %520 = vmatpush1.bf16.msra.mxu0 0
    %521 = vmatprep.subr.bf16.mxu0 0
    %522 = vmatpush1.bf16.msra.mxu0 0
    %523 = vmatprep.subr.bf16.mxu0 0
    %524 = vmatpush1.bf16.msra.mxu0 0
    %525 = vmatprep.subr.bf16.mxu0 0
    %526 = vmatpush1.bf16.msra.mxu0 0
    %527 = vmatprep.subr.bf16.mxu0 0
    %528 = vmatpush1.bf16.msra.mxu0 0
    %529 = vmatprep.mubr.bf16.mxu0 0
    %530 = vmatmul.mubr.bf16.gmra.mrb[0].mxu0 %v425
    %v531 = vpop.f32.mrb[0].mxu0
    %v532 = vadd.f32 %v447, %v531
    %v533 = vpop.f32.mrb[0].mxu0
    %v534 = vpop.f32.mrb[0].mxu0
    %v535 = vpop.f32.mrb[0].mxu0
    %536 = vdwg.mxu0
    %537 = vst [vmem:[#allocation13] sm:$0x3] %v532
    %538 = vst [vmem:[#allocation14] sm:$0x3] %v424
    %539 = vst [vmem:[#allocation16] sm:$0x3] %v422
    // Predicated region
    $region50: #{_policy_fwd_pallas.1} parent=1 // pred_check
      _
    $region51: #{_policy_fwd_pallas.1} parent=1 // pred_check_branch
      %541 = sbr.rel (0) target = $region53
    $region52: #{_policy_fwd_pallas.1} parent=1 // pred_region
      %s543 = ssub.s32 32, 32
      %544 = vsyncadd [#allocation4], %s543
      %s546 = sshll.u32 [#allocation13], 4
      %s547 = int_to_ptr.vmem [resolvable:$true] %s546
      %549 = dma.vmem_to_hbm [thread:$0]  %s547, 32, %s6, [#allocation4]
    $region53: #{_policy_fwd_pallas.1} parent=1 // pred_fallthru
      _
    // Predicated region
    $region54: #{_policy_fwd_pallas.1} parent=1 // pred_check
      _
    $region55: #{_policy_fwd_pallas.1} parent=1 // pred_check_branch
      %551 = sbr.rel (0) target = $region57
    $region56: #{_policy_fwd_pallas.1} parent=1 // pred_region
      %s553 = ssub.s32 32, 32
      %554 = vsyncadd [#allocation15], %s553
      %s556 = sshll.u32 [#allocation14], 4
      %s557 = int_to_ptr.vmem [resolvable:$true] %s556
      %559 = dma.vmem_to_hbm [thread:$0]  %s557, 32, %s7, [#allocation15]
    $region57: #{_policy_fwd_pallas.1} parent=1 // pred_fallthru
      _
    // Predicated region
    $region58: #{_policy_fwd_pallas.1} parent=1 // pred_check
      _
    $region59: #{_policy_fwd_pallas.1} parent=1 // pred_check_branch
      %561 = sbr.rel (0) target = $region61
    $region60: #{_policy_fwd_pallas.1} parent=1 // pred_region
      %s563 = ssub.s32 32, 32
      %564 = vsyncadd [#allocation15], %s563
      %s566 = sshll.u32 [#allocation16], 4
      %s567 = int_to_ptr.vmem [resolvable:$true] %s566
      %569 = dma.vmem_to_hbm [thread:$0]  %s567, 32, %s8, [#allocation15]
    $region61: #{_policy_fwd_pallas.1} parent=1 // pred_fallthru
      _
    // Predicated region
    $region62: #{_policy_fwd_pallas.1} parent=1 // pred_check
      _
    $region63: #{_policy_fwd_pallas.1} parent=1 // pred_check_branch
      %571 = sbr.rel (0) target = $region65
    $region64: #{_policy_fwd_pallas.1} parent=1 // pred_region
      %572 = dma.done [#allocation4], 32
    $region65: #{_policy_fwd_pallas.1} parent=1 // pred_fallthru
      _
    // Predicated region
    $region66: #{_policy_fwd_pallas.1} parent=1 // pred_check
      _
    $region67: #{_policy_fwd_pallas.1} parent=1 // pred_check_branch
      %574 = sbr.rel (0) target = $region69
    $region68: #{_policy_fwd_pallas.1} parent=1 // pred_region
      %575 = dma.done [#allocation15], 32
    $region69: #{_policy_fwd_pallas.1} parent=1 // pred_fallthru
      _
    // Predicated region
    $region70: #{_policy_fwd_pallas.1} parent=1 // pred_check
      _
    $region71: #{_policy_fwd_pallas.1} parent=1 // pred_check_branch
      %577 = sbr.rel (0) target = $region73
    $region72: #{_policy_fwd_pallas.1} parent=1 // pred_region
      %578 = dma.done [#allocation15], 32
    $region73: #{_policy_fwd_pallas.1} parent=1 // pred_fallthru
      _
    %579 = vsyncpa [#allocation3], 1
    %580 = vsyncpa [#allocation6], 1
    %581 = vsyncpa [#allocation9], 1
    %582 = vsyncpa [#allocation12], 1
    %583 = vsyncpa [#allocation4], 1
    %584 = vsyncpa [#allocation15], 1

</llo_original>
